<compile_context>
chip_gen: v5e
topology: v5e:2x2
jax: 0.10.0
libtpu: 0.0.40
codegen_flags: <defaults>
</compile_context>

<pallas_src>
import functools

import numpy as np

import jax
import jax.numpy as jnp
from jax import lax
from jax.experimental import pallas as pl
from jax.experimental.pallas import tpu as pltpu

BN_EPS = 1e-5


def _conv_bn_relu_kernel(x_ref, mask_ref, w_ref, gb_ref, out_ref, stack_ref, *, W, C_pad):
    # x_ref:     (C_pad, M)       f32  channel-major flat input (m = n*H*W + h*W + w)
    # mask_ref:  (9, M)           f32  per-tap validity (0/1), tap = kh*3 + kw
    # w_ref:     (C_out, 9*C_pad) bf16 conv weights, k = tap*C_pad + cin
    # gb_ref:    (C_out, 2)       f32  [:, 0] = gamma, [:, 1] = beta
    # out_ref:   (C_out, M)       f32
    # stack_ref: (9*C_pad, M)     bf16 scratch: masked, shifted im2col tap stack
    _, M = x_ref.shape
    x = x_ref[...]                                            # (C_pad, M) f32

    # Build the im2col stack: tap (kh, kw) reads x at flat offset s = (kh-1)*W + (kw-1).
    # pltpu.roll wraps circularly, but every wrapped / cross-row / cross-image position
    # has mask == 0, so the wrap never reaches the matmul.
    for kh in range(3):
        for kw in range(3):
            t = kh * 3 + kw
            s = (kh - 1) * W + (kw - 1)
            xt = x if s == 0 else pltpu.roll(x, (-s) % M, axis=1)
            if t != 4:                                        # centre tap: always valid
                xt = xt * mask_ref[t:t + 1, :]                # f32 mask multiply
            stack_ref[t * C_pad:(t + 1) * C_pad, :] = xt.astype(jnp.bfloat16)

    # Single K = 9*C_pad matmul on the MXU, f32 accumulation.
    acc = jnp.dot(w_ref[...], stack_ref[...],
                  preferred_element_type=jnp.float32)         # (C_out, M)

    # Single-pass BatchNorm (training-mode batch stats, biased variance) + ReLU.
    # Only valid because all of M lives in this single block; an M-tiled variant must
    # accumulate per-channel sum / sum-of-squares across tiles instead.
    inv_m = 1.0 / M
    mean = jnp.sum(acc, axis=1, keepdims=True) * inv_m        # (C_out, 1)
    ex2 = jnp.sum(acc * acc, axis=1, keepdims=True) * inv_m
    var = jnp.maximum(ex2 - mean * mean, 0.0)
    scale = gb_ref[:, 0:1] * lax.rsqrt(var + BN_EPS)          # rsqrt -> EUP (free slot)
    shift = gb_ref[:, 1:2] - mean * scale
    out_ref[...] = jnp.maximum(acc * scale + shift, 0.0).astype(out_ref.dtype)


@jax.jit
def conv_bn_relu(x_nchw, conv_w, conv_b, gamma, beta):
    """x_nchw: (N, C_in, H, W); conv_w: (C_out, C_in, 3, 3) torch layout."""
    N, C_in, H, W = x_nchw.shape
    C_out = conv_w.shape[0]
    M = N * H * W
    C_pad = -(-C_in // 8) * 8          # round channels up to a sublane multiple

    # NCHW -> channel-major flat (C_pad, M); stays f32 (bf16 cast happens in-kernel).
    x_cm = jnp.transpose(x_nchw, (1, 0, 2, 3)).reshape(C_in, M).astype(jnp.float32)
    x_cm = jnp.pad(x_cm, ((0, C_pad - C_in), (0, 0)))

    # Per-tap boundary masks: pure numpy -> baked in as a constant (no XLA pre-pass).
    m_idx = np.arange(M)
    h0 = (m_idx % (H * W)) // W
    w0 = m_idx % W
    mask9 = np.empty((9, M), np.float32)
    for kh in range(3):
        for kw in range(3):
            hh = h0 + (kh - 1)
            ww = w0 + (kw - 1)
            mask9[kh * 3 + kw] = ((hh >= 0) & (hh < H) & (ww >= 0) & (ww < W)
                                  ).astype(np.float32)
    masks = jnp.asarray(mask9)

    # torch (C_out, C_in, 3, 3) -> (C_out, tap, cin) -> (C_out, 9*C_pad) bf16,
    # K index = tap*C_pad + cin (matches the in-kernel stack layout).
    w_k = jnp.transpose(conv_w.astype(jnp.float32), (0, 2, 3, 1)).reshape(C_out, 9, C_in)
    w_k = jnp.pad(w_k, ((0, 0), (0, 0), (0, C_pad - C_in)))
    w_k = w_k.reshape(C_out, 9 * C_pad).astype(jnp.bfloat16)

    # Conv bias intentionally not used: BN subtracts the per-channel batch mean, which
    # cancels any per-channel constant exactly in the normalized forward output.
    del conv_b

    gb = jnp.stack([gamma.astype(jnp.float32), beta.astype(jnp.float32)], axis=1)

    vmem = pl.BlockSpec(memory_space=pltpu.MemorySpace.VMEM)
    out_cm = pl.pallas_call(
        functools.partial(_conv_bn_relu_kernel, W=W, C_pad=C_pad),
        out_shape=jax.ShapeDtypeStruct((C_out, M), jnp.float32),
        in_specs=[vmem, vmem, vmem, vmem],
        out_specs=vmem,
        scratch_shapes=[pltpu.VMEM((9 * C_pad, M), jnp.bfloat16)],
    )(x_cm, masks, w_k, gb)

    # (C_out, M) -> (C_out, N, H, W) -> NCHW
    return jnp.transpose(out_cm.reshape(C_out, N, H, W), (1, 0, 2, 3))


# TODO(synk): BatchNorm2d running_mean/running_var updates (training-state side effect,
# unbiased variance; would also need the dropped conv bias re-added) are not produced.


def _reference(x, conv_w, conv_b, gamma, beta):
    out = lax.conv_general_dilated(
        x, conv_w, window_strides=(1, 1), padding=((1, 1), (1, 1)),
        dimension_numbers=("NCHW", "OIHW", "NCHW"),
        precision=lax.Precision.HIGHEST)
    out = out + conv_b[None, :, None, None]
    mean = out.mean(axis=(0, 2, 3), keepdims=True)
    var = ((out - mean) ** 2).mean(axis=(0, 2, 3), keepdims=True)
    y = (out - mean) * lax.rsqrt(var + BN_EPS)
    y = y * gamma[None, :, None, None] + beta[None, :, None, None]
    return jnp.maximum(y, 0.0)


if __name__ == "__main__":
    key = jax.random.PRNGKey(0)
    k_x, k_w, k_b, k_g, k_be = jax.random.split(key, 5)

    N, C_in, H, W = 2, 3, 16, 16
    C_out = 16

    x = jax.random.normal(k_x, (N, C_in, H, W), dtype=jnp.float32)

    # Deterministic parameter init (synthetic; matches module shapes).
    fan_in = C_in * 3 * 3
    bound = 1.0 / (fan_in ** 0.5)
    conv_w = jax.random.uniform(k_w, (C_out, C_in, 3, 3), jnp.float32, -bound, bound)
    conv_b = jax.random.uniform(k_b, (C_out,), jnp.float32, -bound, bound)
    gamma = 1.0 + 0.1 * jax.random.normal(k_g, (C_out,), jnp.float32)
    beta = 0.1 * jax.random.normal(k_be, (C_out,), jnp.float32)

    out = jax.block_until_ready(conv_bn_relu(x, conv_w, conv_b, gamma, beta))
    assert out.shape == (N, C_out, H, W)

    ref = jax.block_until_ready(_reference(x, conv_w, conv_b, gamma, beta))
    max_err = float(jnp.max(jnp.abs(out - ref)))
    # bf16 MXU operands with f32 accumulation / f32 BN math -> expect ~4e-3 max error.
    assert max_err < 3e-2, f"max abs error {max_err}"

    print("KERNEL_OK")
</pallas_src>

<mosaic_0001>
module attributes {stable_mosaic.version = 11 : i64} {
  func.func @_conv_bn_relu_kernel(%arg0: memref<8x512xf32, #tpu.memory_space<vmem>>, %arg1: memref<9x512xf32, #tpu.memory_space<vmem>>, %arg2: memref<16x72xbf16, #tpu.memory_space<vmem>>, %arg3: memref<16x2xf32, #tpu.memory_space<vmem>>, %arg4: memref<16x512xf32, #tpu.memory_space<vmem>>, %arg5: memref<72x512xbf16, #tpu.memory_space<vmem>>) attributes {dimension_semantics = [], scalar_prefetch = 0 : i64, scratch_operands = 1 : i64, tpu.core_type = #tpu.core_type<tc>} {
    %c0 = arith.constant 0 : index
    %c0_0 = arith.constant 0 : index
    %0 = vector.load %arg0[%c0, %c0_0] : memref<8x512xf32, #tpu.memory_space<vmem>>, vector<8x512xf32>
    %c17_i32 = arith.constant 17 : i32
    %1 = tpu.dynamic_rotate %0 by %c17_i32 dim 1 : vector<8x512xf32>, i32 -> vector<8x512xf32>
    %c0_1 = arith.constant 0 : index
    %c0_2 = arith.constant 0 : index
    %2 = vector.load %arg1[%c0_1, %c0_2] : memref<9x512xf32, #tpu.memory_space<vmem>>, vector<1x512xf32>
    %3 = vector.broadcast %2 : vector<1x512xf32> to vector<8x512xf32>
    %4 = arith.mulf %1, %3 : vector<8x512xf32>
    %5 = arith.truncf %4 : vector<8x512xf32> to vector<8x512xbf16>
    %c0_3 = arith.constant 0 : index
    %c0_4 = arith.constant 0 : index
    %6 = vector.load %arg5[%c0_3, %c0_4] : memref<72x512xbf16, #tpu.memory_space<vmem>>, vector<8x512xbf16>
    tpu.vector_store %arg5[%c0_3, %c0_4], %5 {strides = array<i32>} : memref<72x512xbf16, #tpu.memory_space<vmem>>, vector<8x512xbf16>,
    %c16_i32 = arith.constant 16 : i32
    %7 = tpu.dynamic_rotate %0 by %c16_i32 dim 1 : vector<8x512xf32>, i32 -> vector<8x512xf32>
    %c1 = arith.constant 1 : index
    %c0_5 = arith.constant 0 : index
    %8 = vector.load %arg1[%c1, %c0_5] : memref<9x512xf32, #tpu.memory_space<vmem>>, vector<1x512xf32>
    %9 = vector.broadcast %8 : vector<1x512xf32> to vector<8x512xf32>
    %10 = arith.mulf %7, %9 : vector<8x512xf32>
    %11 = arith.truncf %10 : vector<8x512xf32> to vector<8x512xbf16>
    %c8 = arith.constant 8 : index
    %c0_6 = arith.constant 0 : index
    %12 = vector.load %arg5[%c8, %c0_6] : memref<72x512xbf16, #tpu.memory_space<vmem>>, vector<8x512xbf16>
    tpu.vector_store %arg5[%c8, %c0_6], %11 {strides = array<i32>} : memref<72x512xbf16, #tpu.memory_space<vmem>>, vector<8x512xbf16>,
    %c15_i32 = arith.constant 15 : i32
    %13 = tpu.dynamic_rotate %0 by %c15_i32 dim 1 : vector<8x512xf32>, i32 -> vector<8x512xf32>
    %c2 = arith.constant 2 : index
    %c0_7 = arith.constant 0 : index
    %14 = vector.load %arg1[%c2, %c0_7] : memref<9x512xf32, #tpu.memory_space<vmem>>, vector<1x512xf32>
    %15 = vector.broadcast %14 : vector<1x512xf32> to vector<8x512xf32>
    %16 = arith.mulf %13, %15 : vector<8x512xf32>
    %17 = arith.truncf %16 : vector<8x512xf32> to vector<8x512xbf16>
    %c16 = arith.constant 16 : index
    %c0_8 = arith.constant 0 : index
    %18 = vector.load %arg5[%c16, %c0_8] : memref<72x512xbf16, #tpu.memory_space<vmem>>, vector<8x512xbf16>
    tpu.vector_store %arg5[%c16, %c0_8], %17 {strides = array<i32>} : memref<72x512xbf16, #tpu.memory_space<vmem>>, vector<8x512xbf16>,
    %c1_i32 = arith.constant 1 : i32
    %19 = tpu.dynamic_rotate %0 by %c1_i32 dim 1 : vector<8x512xf32>, i32 -> vector<8x512xf32>
    %c3 = arith.constant 3 : index
    %c0_9 = arith.constant 0 : index
    %20 = vector.load %arg1[%c3, %c0_9] : memref<9x512xf32, #tpu.memory_space<vmem>>, vector<1x512xf32>
    %21 = vector.broadcast %20 : vector<1x512xf32> to vector<8x512xf32>
    %22 = arith.mulf %19, %21 : vector<8x512xf32>
    %23 = arith.truncf %22 : vector<8x512xf32> to vector<8x512xbf16>
    %c24 = arith.constant 24 : index
    %c0_10 = arith.constant 0 : index
    %24 = vector.load %arg5[%c24, %c0_10] : memref<72x512xbf16, #tpu.memory_space<vmem>>, vector<8x512xbf16>
    tpu.vector_store %arg5[%c24, %c0_10], %23 {strides = array<i32>} : memref<72x512xbf16, #tpu.memory_space<vmem>>, vector<8x512xbf16>,
    %25 = arith.truncf %0 : vector<8x512xf32> to vector<8x512xbf16>
    %c32 = arith.constant 32 : index
    %c0_11 = arith.constant 0 : index
    %26 = vector.load %arg5[%c32, %c0_11] : memref<72x512xbf16, #tpu.memory_space<vmem>>, vector<8x512xbf16>
    tpu.vector_store %arg5[%c32, %c0_11], %25 {strides = array<i32>} : memref<72x512xbf16, #tpu.memory_space<vmem>>, vector<8x512xbf16>,
    %c511_i32 = arith.constant 511 : i32
    %27 = tpu.dynamic_rotate %0 by %c511_i32 dim 1 : vector<8x512xf32>, i32 -> vector<8x512xf32>
    %c5 = arith.constant 5 : index
    %c0_12 = arith.constant 0 : index
    %28 = vector.load %arg1[%c5, %c0_12] : memref<9x512xf32, #tpu.memory_space<vmem>>, vector<1x512xf32>
    %29 = vector.broadcast %28 : vector<1x512xf32> to vector<8x512xf32>
    %30 = arith.mulf %27, %29 : vector<8x512xf32>
    %31 = arith.truncf %30 : vector<8x512xf32> to vector<8x512xbf16>
    %c40 = arith.constant 40 : index
    %c0_13 = arith.constant 0 : index
    %32 = vector.load %arg5[%c40, %c0_13] : memref<72x512xbf16, #tpu.memory_space<vmem>>, vector<8x512xbf16>
    tpu.vector_store %arg5[%c40, %c0_13], %31 {strides = array<i32>} : memref<72x512xbf16, #tpu.memory_space<vmem>>, vector<8x512xbf16>,
    %c497_i32 = arith.constant 497 : i32
    %33 = tpu.dynamic_rotate %0 by %c497_i32 dim 1 : vector<8x512xf32>, i32 -> vector<8x512xf32>
    %c6 = arith.constant 6 : index
    %c0_14 = arith.constant 0 : index
    %34 = vector.load %arg1[%c6, %c0_14] : memref<9x512xf32, #tpu.memory_space<vmem>>, vector<1x512xf32>
    %35 = vector.broadcast %34 : vector<1x512xf32> to vector<8x512xf32>
    %36 = arith.mulf %33, %35 : vector<8x512xf32>
    %37 = arith.truncf %36 : vector<8x512xf32> to vector<8x512xbf16>
    %c48 = arith.constant 48 : index
    %c0_15 = arith.constant 0 : index
    %38 = vector.load %arg5[%c48, %c0_15] : memref<72x512xbf16, #tpu.memory_space<vmem>>, vector<8x512xbf16>
    tpu.vector_store %arg5[%c48, %c0_15], %37 {strides = array<i32>} : memref<72x512xbf16, #tpu.memory_space<vmem>>, vector<8x512xbf16>,
    %c496_i32 = arith.constant 496 : i32
    %39 = tpu.dynamic_rotate %0 by %c496_i32 dim 1 : vector<8x512xf32>, i32 -> vector<8x512xf32>
    %c7 = arith.constant 7 : index
    %c0_16 = arith.constant 0 : index
    %40 = vector.load %arg1[%c7, %c0_16] : memref<9x512xf32, #tpu.memory_space<vmem>>, vector<1x512xf32>
    %41 = vector.broadcast %40 : vector<1x512xf32> to vector<8x512xf32>
    %42 = arith.mulf %39, %41 : vector<8x512xf32>
    %43 = arith.truncf %42 : vector<8x512xf32> to vector<8x512xbf16>
    %c56 = arith.constant 56 : index
    %c0_17 = arith.constant 0 : index
    %44 = vector.load %arg5[%c56, %c0_17] : memref<72x512xbf16, #tpu.memory_space<vmem>>, vector<8x512xbf16>
    tpu.vector_store %arg5[%c56, %c0_17], %43 {strides = array<i32>} : memref<72x512xbf16, #tpu.memory_space<vmem>>, vector<8x512xbf16>,
    %c495_i32 = arith.constant 495 : i32
    %45 = tpu.dynamic_rotate %0 by %c495_i32 dim 1 : vector<8x512xf32>, i32 -> vector<8x512xf32>
    %c8_18 = arith.constant 8 : index
    %c0_19 = arith.constant 0 : index
    %46 = vector.load %arg1[%c8_18, %c0_19] : memref<9x512xf32, #tpu.memory_space<vmem>>, vector<1x512xf32>
    %47 = vector.broadcast %46 : vector<1x512xf32> to vector<8x512xf32>
    %48 = arith.mulf %45, %47 : vector<8x512xf32>
    %49 = arith.truncf %48 : vector<8x512xf32> to vector<8x512xbf16>
    %c64 = arith.constant 64 : index
    %c0_20 = arith.constant 0 : index
    %50 = vector.load %arg5[%c64, %c0_20] : memref<72x512xbf16, #tpu.memory_space<vmem>>, vector<8x512xbf16>
    tpu.vector_store %arg5[%c64, %c0_20], %49 {strides = array<i32>} : memref<72x512xbf16, #tpu.memory_space<vmem>>, vector<8x512xbf16>,
    %c0_21 = arith.constant 0 : index
    %c0_22 = arith.constant 0 : index
    %51 = vector.load %arg2[%c0_21, %c0_22] : memref<16x72xbf16, #tpu.memory_space<vmem>>, vector<16x72xbf16>
    %c0_23 = arith.constant 0 : index
    %c0_24 = arith.constant 0 : index
    %52 = vector.load %arg5[%c0_23, %c0_24] : memref<72x512xbf16, #tpu.memory_space<vmem>>, vector<72x512xbf16>
    %cst = arith.constant dense<0.000000e+00> : vector<16x512xf32>
    %53 = tpu.matmul %51, %52, %cst {dimension_numbers = #tpu.dot_dimension_numbers<[1], [0], [0], [1], [0, 0, 1, 1], [], []>} : vector<16x72xbf16>, vector<72x512xbf16>, vector<16x512xf32> -> vector<16x512xf32>
    %cst_25 = arith.constant dense<0.000000e+00> : vector<16xf32>
    %54 = vector.multi_reduction <add>, %53, %cst_25 [1] : vector<16x512xf32> to vector<16xf32>
    %55 = vector.shape_cast %54 : vector<16xf32> to vector<16x1xf32>
    %cst_26 = arith.constant 0.001953125 : f32
    %56 = vector.broadcast %cst_26 : f32 to vector<16x1xf32>
    %57 = arith.mulf %55, %56 : vector<16x1xf32>
    %58 = arith.mulf %53, %53 : vector<16x512xf32>
    %cst_27 = arith.constant dense<0.000000e+00> : vector<16xf32>
    %59 = vector.multi_reduction <add>, %58, %cst_27 [1] : vector<16x512xf32> to vector<16xf32>
    %60 = vector.shape_cast %59 : vector<16xf32> to vector<16x1xf32>
    %cst_28 = arith.constant 0.001953125 : f32
    %61 = vector.broadcast %cst_28 : f32 to vector<16x1xf32>
    %62 = arith.mulf %60, %61 : vector<16x1xf32>
    %63 = arith.mulf %57, %57 : vector<16x1xf32>
    %64 = arith.subf %62, %63 : vector<16x1xf32>
    %cst_29 = arith.constant 0.000000e+00 : f32
    %65 = vector.broadcast %cst_29 : f32 to vector<16x1xf32>
    %66 = arith.maximumf %64, %65 : vector<16x1xf32>
    %c0_30 = arith.constant 0 : index
    %c0_31 = arith.constant 0 : index
    %67 = vector.load %arg3[%c0_30, %c0_31] : memref<16x2xf32, #tpu.memory_space<vmem>>, vector<16x1xf32>
    %cst_32 = arith.constant 9.99999974E-6 : f32
    %68 = vector.broadcast %cst_32 : f32 to vector<16x1xf32>
    %69 = arith.addf %66, %68 : vector<16x1xf32>
    %70 = math.rsqrt %69 : vector<16x1xf32>
    %71 = arith.mulf %67, %70 : vector<16x1xf32>
    %c0_33 = arith.constant 0 : index
    %c1_34 = arith.constant 1 : index
    %72 = vector.load %arg3[%c0_33, %c1_34] : memref<16x2xf32, #tpu.memory_space<vmem>>, vector<16x1xf32>
    %73 = arith.mulf %57, %71 : vector<16x1xf32>
    %74 = arith.subf %72, %73 : vector<16x1xf32>
    %75 = vector.broadcast %71 : vector<16x1xf32> to vector<16x512xf32>
    %76 = arith.mulf %53, %75 : vector<16x512xf32>
    %77 = vector.broadcast %74 : vector<16x1xf32> to vector<16x512xf32>
    %78 = arith.addf %76, %77 : vector<16x512xf32>
    %cst_35 = arith.constant 0.000000e+00 : f32
    %79 = vector.broadcast %cst_35 : f32 to vector<16x512xf32>
    %80 = arith.maximumf %78, %79 : vector<16x512xf32>
    %c0_36 = arith.constant 0 : index
    %c0_37 = arith.constant 0 : index
    %81 = vector.load %arg4[%c0_36, %c0_37] : memref<16x512xf32, #tpu.memory_space<vmem>>, vector<16x512xf32>
    tpu.vector_store %arg4[%c0_36, %c0_37], %80 {strides = array<i32>} : memref<16x512xf32, #tpu.memory_space<vmem>>, vector<16x512xf32>,
    return
  }
}

</mosaic_0001>

<llo_original>
// kernel: conv_bn_relu.1
$region0: #{conv_bn_relu.1}
  #allocation0 [shape = 'u32[]', space=smem, size = 0x4, offset = 0x4, fixed_abs, tag = 'smem constant byte address 0x4 - core index']
  #allocation1 [shape = 'u32[72,128]{1,0:T(1,128)}', space=vmem, size = 0x9000, scoped, tag = 'internal scratch']
  #allocation2 [shape = 'bf16[72,512]{1,0:T(8,128)(2,1)}', space=vmem, size = 0x12000, scoped, tag = 'scratch operand']
  %s0 = inlined_call_operand.vmem [shape: f32[8,512], index: 0, kind: input, shape index: {}]
  %s1 = inlined_call_operand.vmem [shape: f32[9,512], index: 1, kind: input, shape index: {}]
  %s2 = inlined_call_operand.vmem [shape: bf16[16,72], index: 2, kind: input, shape index: {}]
  %s3 = inlined_call_operand.vmem [shape: f32[16,2], index: 3, kind: input, shape index: {}]
  %s4 = inlined_call_operand.vmem [shape: f32[16,512], index: 4, kind: output, shape index: {}]
  %s5 = sld [smem:[#allocation0]]
  $region26: #{conv_bn_relu.1} parent=0
    _
  %s7 = ssub.s32 1, %s5
  %s8 = scalar_select 0, %s7, %s5
  // Predicated region
  $region2: #{conv_bn_relu.1} parent=0 // pred_check
    _
  $region3: #{conv_bn_relu.1} parent=0 // pred_check_branch
    %10 = sbr.rel (0) target = $region5
  $region4: #{conv_bn_relu.1} parent=0 // pred_region
    _
  $region5: #{conv_bn_relu.1} parent=0 // pred_fallthru
    _
  // Predicated region
  $region6: #{conv_bn_relu.1} parent=0 // pred_check
    _
  $region7: #{conv_bn_relu.1} parent=0 // pred_check_branch
    %12 = sbr.rel (0) target = $region9
  $region8: #{conv_bn_relu.1} parent=0 // pred_region
    _
  $region9: #{conv_bn_relu.1} parent=0 // pred_fallthru
    _
  // Predicated region
  $region10: #{conv_bn_relu.1} parent=0 // pred_check
    _
  $region11: #{conv_bn_relu.1} parent=0 // pred_check_branch
    %14 = sbr.rel (0) target = $region13
  $region12: #{conv_bn_relu.1} parent=0 // pred_region
    _
  $region13: #{conv_bn_relu.1} parent=0 // pred_fallthru
    _
  // Predicated region
  $region14: #{conv_bn_relu.1} parent=0 // pred_check
    _
  $region15: #{conv_bn_relu.1} parent=0 // pred_check_branch
    %16 = sbr.rel (0) target = $region17
  $region16: #{conv_bn_relu.1} parent=0 // pred_region
    _
  $region17: #{conv_bn_relu.1} parent=0 // pred_fallthru
    _
  %v18 = vld [vmem:[%s0] sm:$0xff]
  %v19 = vld [vmem:[%s0 + $0x8] sm:$0xff]
  %v20 = vld [vmem:[%s0 + $0x10] sm:$0xff]
  %v21 = vld [vmem:[%s0 + $0x18] sm:$0xff]
  %22 = vrot.lane.b32.xlu0 %v18, 17
  %v23 = vpop.permute.xlu0 %22
  %24 = vrot.lane.b32.xlu0 %v19, 17
  %v25 = vpop.permute.xlu0 %24
  %26 = vrot.lane.b32.xlu0 %v20, 17
  %v27 = vpop.permute.xlu0 %26
  %28 = vrot.lane.b32.xlu0 %v21, 17
  %v29 = vpop.permute.xlu0 %28
  %v30 = vlaneseq
  %v31 = vand.u32 %v30, 127
  %vm32 = vcmp.lt.s32.totalorder %v31, 17
  %v33 = vsel %vm32, %v27, %v29
  %v34 = vsel %vm32, %v25, %v27
  %v35 = vsel %vm32, %v23, %v25
  %v36 = vsel %vm32, %v29, %v23
  %v37 = vld [vmem:[%s1] ss:$8 sm:$0xf]
  %v39 = vperm.slane %v37, 0
  %v40 = vperm.slane %v37, 1
  %v41 = vperm.slane %v37, 2
  %v42 = vperm.slane %v37, 3
  %v47 = vmul.f32 %v36, %v39
  %v48 = vmul.f32 %v35, %v40
  %v49 = vmul.f32 %v34, %v41
  %v50 = vmul.f32 %v33, %v42
  %v51 = vpack.c.bf16 %v48, %v47
  %v52 = vpack.c.bf16 %v50, %v49
  %53 = vst [vmem:[#allocation2] sm:$0xff] %v51
  %54 = vst [vmem:[#allocation2 + $0x8] sm:$0xff] %v52
  %55 = vrot.lane.b32.xlu0 %v18, 16
  %v56 = vpop.permute.xlu0 %55
  %57 = vrot.lane.b32.xlu0 %v19, 16
  %v58 = vpop.permute.xlu0 %57
  %59 = vrot.lane.b32.xlu0 %v20, 16
  %v60 = vpop.permute.xlu0 %59
  %61 = vrot.lane.b32.xlu0 %v21, 16
  %v62 = vpop.permute.xlu0 %61
  %vm63 = vcmp.lt.s32.totalorder %v31, 16
  %v64 = vsel %vm63, %v60, %v62
  %v65 = vsel %vm63, %v58, %v60
  %v66 = vsel %vm63, %v56, %v58
  %v67 = vsel %vm63, %v62, %v56
  %s68 = scalar_lea.vmem %s1, 1
  %v69 = vld [vmem:[%s68] ss:$8 sm:$0xf]
  %v71 = vperm.slane %v69, 0
  %v72 = vperm.slane %v69, 1
  %v73 = vperm.slane %v69, 2
  %v74 = vperm.slane %v69, 3
  %v79 = vmul.f32 %v67, %v71
  %v80 = vmul.f32 %v66, %v72
  %v81 = vmul.f32 %v65, %v73
  %v82 = vmul.f32 %v64, %v74
  %v83 = vpack.c.bf16 %v80, %v79
  %v84 = vpack.c.bf16 %v82, %v81
  %85 = vst [vmem:[#allocation2 + $0x10] sm:$0xff] %v83
  %86 = vst [vmem:[#allocation2 + $0x18] sm:$0xff] %v84
  %87 = vrot.lane.b32.xlu0 %v18, 15
  %v88 = vpop.permute.xlu0 %87
  %89 = vrot.lane.b32.xlu0 %v19, 15
  %v90 = vpop.permute.xlu0 %89
  %91 = vrot.lane.b32.xlu0 %v20, 15
  %v92 = vpop.permute.xlu0 %91
  %93 = vrot.lane.b32.xlu0 %v21, 15
  %v94 = vpop.permute.xlu0 %93
  %vm95 = vcmp.lt.s32.totalorder %v31, 15
  %v96 = vsel %vm95, %v92, %v94
  %v97 = vsel %vm95, %v90, %v92
  %v98 = vsel %vm95, %v88, %v90
  %v99 = vsel %vm95, %v94, %v88
  %s100 = scalar_lea.vmem %s1, 2
  %v101 = vld [vmem:[%s100] ss:$8 sm:$0xf]
  %v103 = vperm.slane %v101, 0
  %v104 = vperm.slane %v101, 1
  %v105 = vperm.slane %v101, 2
  %v106 = vperm.slane %v101, 3
  %v111 = vmul.f32 %v99, %v103
  %v112 = vmul.f32 %v98, %v104
  %v113 = vmul.f32 %v97, %v105
  %v114 = vmul.f32 %v96, %v106
  %v115 = vpack.c.bf16 %v112, %v111
  %v116 = vpack.c.bf16 %v114, %v113
  %117 = vst [vmem:[#allocation2 + $0x20] sm:$0xff] %v115
  %118 = vst [vmem:[#allocation2 + $0x28] sm:$0xff] %v116
  %119 = vrot.lane.b32.xlu0 %v18, 1
  %v120 = vpop.permute.xlu0 %119
  %121 = vrot.lane.b32.xlu0 %v19, 1
  %v122 = vpop.permute.xlu0 %121
  %123 = vrot.lane.b32.xlu0 %v20, 1
  %v124 = vpop.permute.xlu0 %123
  %125 = vrot.lane.b32.xlu0 %v21, 1
  %v126 = vpop.permute.xlu0 %125
  %vm127 = vcmp.lt.s32.totalorder %v31, 1
  %v128 = vsel %vm127, %v124, %v126
  %v129 = vsel %vm127, %v122, %v124
  %v130 = vsel %vm127, %v120, %v122
  %v131 = vsel %vm127, %v126, %v120
  %s132 = scalar_lea.vmem %s1, 3
  %v133 = vld [vmem:[%s132] ss:$8 sm:$0xf]
  %v135 = vperm.slane %v133, 0
  %v136 = vperm.slane %v133, 1
  %v137 = vperm.slane %v133, 2
  %v138 = vperm.slane %v133, 3
  %v143 = vmul.f32 %v131, %v135
  %v144 = vmul.f32 %v130, %v136
  %v145 = vmul.f32 %v129, %v137
  %v146 = vmul.f32 %v128, %v138
  %v147 = vpack.c.bf16 %v144, %v143
  %v148 = vpack.c.bf16 %v146, %v145
  %149 = vst [vmem:[#allocation2 + $0x30] sm:$0xff] %v147
  %150 = vst [vmem:[#allocation2 + $0x38] sm:$0xff] %v148
  %v151 = vpack.c.bf16 %v19, %v18
  %v152 = vpack.c.bf16 %v21, %v20
  %153 = vst [vmem:[#allocation2 + $0x40] sm:$0xff] %v151
  %154 = vst [vmem:[#allocation2 + $0x48] sm:$0xff] %v152
  %155 = vrot.lane.b32.xlu0 %v18, 127
  %v156 = vpop.permute.xlu0 %155
  %157 = vrot.lane.b32.xlu0 %v19, 127
  %v158 = vpop.permute.xlu0 %157
  %159 = vrot.lane.b32.xlu0 %v20, 127
  %v160 = vpop.permute.xlu0 %159
  %161 = vrot.lane.b32.xlu0 %v21, 127
  %v162 = vpop.permute.xlu0 %161
  %vm163 = vcmp.lt.s32.totalorder %v31, 127
  %v164 = vsel %vm163, %v160, %v162
  %v165 = vsel %vm163, %v158, %v160
  %v166 = vsel %vm163, %v156, %v158
  %v167 = vsel %vm163, %v162, %v156
  %s168 = scalar_lea.vmem %s1, 5
  %v169 = vld [vmem:[%s168] ss:$8 sm:$0xf]
  %v171 = vperm.slane %v169, 0
  %v172 = vperm.slane %v169, 1
  %v173 = vperm.slane %v169, 2
  %v174 = vperm.slane %v169, 3
  %v179 = vmul.f32 %v166, %v171
  %v180 = vmul.f32 %v165, %v172
  %v181 = vmul.f32 %v164, %v173
  %v182 = vmul.f32 %v167, %v174
  %v183 = vpack.c.bf16 %v180, %v179
  %v184 = vpack.c.bf16 %v182, %v181
  %185 = vst [vmem:[#allocation2 + $0x50] sm:$0xff] %v183
  %186 = vst [vmem:[#allocation2 + $0x58] sm:$0xff] %v184
  %187 = vrot.lane.b32.xlu0 %v18, 113
  %v188 = vpop.permute.xlu0 %187
  %189 = vrot.lane.b32.xlu0 %v19, 113
  %v190 = vpop.permute.xlu0 %189
  %191 = vrot.lane.b32.xlu0 %v20, 113
  %v192 = vpop.permute.xlu0 %191
  %193 = vrot.lane.b32.xlu0 %v21, 113
  %v194 = vpop.permute.xlu0 %193
  %vm195 = vcmp.lt.s32.totalorder %v31, 113
  %v196 = vsel %vm195, %v192, %v194
  %v197 = vsel %vm195, %v190, %v192
  %v198 = vsel %vm195, %v188, %v190
  %v199 = vsel %vm195, %v194, %v188
  %s200 = scalar_lea.vmem %s1, 6
  %v201 = vld [vmem:[%s200] ss:$8 sm:$0xf]
  %v203 = vperm.slane %v201, 0
  %v204 = vperm.slane %v201, 1
  %v205 = vperm.slane %v201, 2
  %v206 = vperm.slane %v201, 3
  %v211 = vmul.f32 %v198, %v203
  %v212 = vmul.f32 %v197, %v204
  %v213 = vmul.f32 %v196, %v205
  %v214 = vmul.f32 %v199, %v206
  %v215 = vpack.c.bf16 %v212, %v211
  %v216 = vpack.c.bf16 %v214, %v213
  %217 = vst [vmem:[#allocation2 + $0x60] sm:$0xff] %v215
  %218 = vst [vmem:[#allocation2 + $0x68] sm:$0xff] %v216
  %219 = vrot.lane.b32.xlu0 %v18, 112
  %v220 = vpop.permute.xlu0 %219
  %221 = vrot.lane.b32.xlu0 %v19, 112
  %v222 = vpop.permute.xlu0 %221
  %223 = vrot.lane.b32.xlu0 %v20, 112
  %v224 = vpop.permute.xlu0 %223
  %225 = vrot.lane.b32.xlu0 %v21, 112
  %v226 = vpop.permute.xlu0 %225
  %vm227 = vcmp.lt.s32.totalorder %v31, 112
  %v228 = vsel %vm227, %v224, %v226
  %v229 = vsel %vm227, %v222, %v224
  %v230 = vsel %vm227, %v220, %v222
  %v231 = vsel %vm227, %v226, %v220
  %s232 = scalar_lea.vmem %s1, 7
  %v233 = vld [vmem:[%s232] ss:$8 sm:$0xf]
  %v235 = vperm.slane %v233, 0
  %v236 = vperm.slane %v233, 1
  %v237 = vperm.slane %v233, 2
  %v238 = vperm.slane %v233, 3
  %v243 = vmul.f32 %v230, %v235
  %v244 = vmul.f32 %v229, %v236
  %v245 = vmul.f32 %v228, %v237
  %v246 = vmul.f32 %v231, %v238
  %v247 = vpack.c.bf16 %v244, %v243
  %v248 = vpack.c.bf16 %v246, %v245
  %249 = vst [vmem:[#allocation2 + $0x70] sm:$0xff] %v247
  %250 = vst [vmem:[#allocation2 + $0x78] sm:$0xff] %v248
  %251 = vrot.lane.b32.xlu0 %v18, 111
  %v252 = vpop.permute.xlu0 %251
  %253 = vrot.lane.b32.xlu0 %v19, 111
  %v254 = vpop.permute.xlu0 %253
  %255 = vrot.lane.b32.xlu0 %v20, 111
  %v256 = vpop.permute.xlu0 %255
  %257 = vrot.lane.b32.xlu0 %v21, 111
  %v258 = vpop.permute.xlu0 %257
  %vm259 = vcmp.lt.s32.totalorder %v31, 111
  %v260 = vsel %vm259, %v256, %v258
  %v261 = vsel %vm259, %v254, %v256
  %v262 = vsel %vm259, %v252, %v254
  %v263 = vsel %vm259, %v258, %v252
  %s264 = scalar_lea.vmem %s1, 32
  %v265 = vld [vmem:[%s264] ss:$8 sm:$0xf]
  %v267 = vperm.slane %v265, 0
  %v268 = vperm.slane %v265, 1
  %v269 = vperm.slane %v265, 2
  %v270 = vperm.slane %v265, 3
  %v275 = vmul.f32 %v262, %v267
  %v276 = vmul.f32 %v261, %v268
  %v277 = vmul.f32 %v260, %v269
  %v278 = vmul.f32 %v263, %v270
  %v279 = vpack.c.bf16 %v276, %v275
  %v280 = vpack.c.bf16 %v278, %v277
  %281 = vst [vmem:[#allocation2 + $0x80] sm:$0xff] %v279
  %282 = vst [vmem:[#allocation2 + $0x88] sm:$0xff] %v280
  %v283 = vld [vmem:[%s2] sm:$0xf]
  %v284 = vld [vmem:[%s2 + $0x4] sm:$0xf]
  %v285 = vld [vmem:[#allocation2] sm:$0xff]
  %v286 = vld [vmem:[#allocation2 + $0x8] sm:$0xff]
  %v287 = vld [vmem:[#allocation2 + $0x10] sm:$0xff]
  %v288 = vld [vmem:[#allocation2 + $0x18] sm:$0xff]
  %v289 = vld [vmem:[#allocation2 + $0x20] sm:$0xff]
  %v290 = vld [vmem:[#allocation2 + $0x28] sm:$0xff]
  %v291 = vld [vmem:[#allocation2 + $0x30] sm:$0xff]
  %v292 = vld [vmem:[#allocation2 + $0x38] sm:$0xff]
  %v293 = vld [vmem:[#allocation2 + $0x40] sm:$0xff]
  %v294 = vld [vmem:[#allocation2 + $0x48] sm:$0xff]
  %v295 = vld [vmem:[#allocation2 + $0x50] sm:$0xff]
  %v296 = vld [vmem:[#allocation2 + $0x58] sm:$0xff]
  %v297 = vld [vmem:[#allocation2 + $0x60] sm:$0xff]
  %v298 = vld [vmem:[#allocation2 + $0x68] sm:$0xff]
  %v299 = vld [vmem:[#allocation2 + $0x70] sm:$0xff]
  %v300 = vld [vmem:[#allocation2 + $0x78] sm:$0xff]
  %v301 = vld [vmem:[#allocation2 + $0x80] sm:$0xff]
  %v302 = vld [vmem:[#allocation2 + $0x88] sm:$0xff]
  %v305 = vunpack.c.l.b16 %v283
  %v306 = vunpack.c.l.b16 %v284
  %v307 = vpack.c.b16 %v306, %v305
  %v326 = vunpack.c.l.b16 %v285
  %v327 = vunpack.c.h.b16 %v285
  %v328 = vunpack.c.l.b16 %v286
  %v329 = vunpack.c.h.b16 %v286
  %v330 = vunpack.c.l.b16 %v287
  %v331 = vunpack.c.h.b16 %v287
  %v332 = vunpack.c.l.b16 %v288
  %v333 = vunpack.c.h.b16 %v288
  %v334 = vunpack.c.l.b16 %v289
  %v335 = vunpack.c.h.b16 %v289
  %v336 = vunpack.c.l.b16 %v290
  %v337 = vunpack.c.h.b16 %v290
  %v338 = vunpack.c.l.b16 %v291
  %v339 = vunpack.c.h.b16 %v291
  %v340 = vunpack.c.l.b16 %v292
  %v341 = vunpack.c.h.b16 %v292
  %v342 = vunpack.c.l.b16 %v293
  %v343 = vunpack.c.h.b16 %v293
  %v344 = vunpack.c.l.b16 %v294
  %v345 = vunpack.c.h.b16 %v294
  %v346 = vunpack.c.l.b16 %v295
  %v347 = vunpack.c.h.b16 %v295
  %v348 = vunpack.c.l.b16 %v296
  %v349 = vunpack.c.h.b16 %v296
  %v350 = vunpack.c.l.b16 %v297
  %v351 = vunpack.c.h.b16 %v297
  %v352 = vunpack.c.l.b16 %v298
  %v353 = vunpack.c.h.b16 %v298
  %v354 = vunpack.c.l.b16 %v299
  %v355 = vunpack.c.h.b16 %v299
  %v356 = vunpack.c.l.b16 %v300
  %v357 = vunpack.c.h.b16 %v300
  %v358 = vunpack.c.l.b16 %v301
  %v359 = vunpack.c.h.b16 %v301
  %v360 = vunpack.c.l.b16 %v302
  %v361 = vunpack.c.h.b16 %v302
  %v362 = vpack.c.b16 %v330, %v326
  %v363 = vpack.c.b16 %v331, %v327
  %v364 = vpack.c.b16 %v332, %v328
  %v365 = vpack.c.b16 %v333, %v329
  %v366 = vpack.c.b16 %v338, %v334
  %v367 = vpack.c.b16 %v339, %v335
  %v368 = vpack.c.b16 %v340, %v336
  %v369 = vpack.c.b16 %v341, %v337
  %v370 = vpack.c.b16 %v346, %v342
  %v371 = vpack.c.b16 %v347, %v343
  %v372 = vpack.c.b16 %v348, %v344
  %v373 = vpack.c.b16 %v349, %v345
  %v374 = vpack.c.b16 %v354, %v350
  %v375 = vpack.c.b16 %v355, %v351
  %v376 = vpack.c.b16 %v356, %v352
  %v377 = vpack.c.b16 %v357, %v353
  %v378 = vpack.c.b16 %v358, %v358
  %v379 = vpack.c.b16 %v359, %v359
  %v380 = vpack.c.b16 %v360, %v360
  %v381 = vpack.c.b16 %v361, %v361
  %vm398 = vcmask 588800
  %v400 = vsel %vm398, %v307, 0
  %vm402 = vcmask 1043456
  %v404 = vsel %vm402, %v378, 0
  %v407 = vsel %vm402, %v379, 0
  %v410 = vsel %vm402, %v380, 0
  %v413 = vsel %vm402, %v381, 0
  %415 = vmatpush.bf16.msra.mxu0 0
  %416 = vmatpush.bf16.msra.mxu0 0
  %417 = vmatpush.bf16.msra.mxu0 0
  %418 = vmatpush.bf16.msra.mxu0 %v404
  %419 = vmatpush.bf16.msra.mxu0 %v374
  %420 = vmatpush.bf16.msra.mxu0 %v370
  %421 = vmatpush.bf16.msra.mxu0 %v366
  %422 = vmatpush.bf16.msra.mxu0 %v362
  %423 = vmatmul.bf16.gmra.mxu0 %v400
  %v424 = vpop.f32.mrf.mxu0
  %v425 = vadd.f32 0.0, %v424
  %v426 = vpop.f32.mrf.mxu0
  %v427 = vadd.f32 0.0, %v426
  %428 = vdwg.mxu0
  %429 = vmatpush.bf16.msra.mxu0 0
  %430 = vmatpush.bf16.msra.mxu0 0
  %431 = vmatpush.bf16.msra.mxu0 0
  %432 = vmatpush.bf16.msra.mxu0 %v407
  %433 = vmatpush.bf16.msra.mxu0 %v375
  %434 = vmatpush.bf16.msra.mxu0 %v371
  %435 = vmatpush.bf16.msra.mxu0 %v367
  %436 = vmatpush.bf16.msra.mxu0 %v363
  %437 = vmatmul.bf16.gmra.mxu0 %v400
  %v438 = vpop.f32.mrf.mxu0
  %v439 = vadd.f32 0.0, %v438
  %v440 = vpop.f32.mrf.mxu0
  %v441 = vadd.f32 0.0, %v440
  %442 = vdwg.mxu0
  %443 = vmatpush.bf16.msra.mxu0 0
  %444 = vmatpush.bf16.msra.mxu0 0
  %445 = vmatpush.bf16.msra.mxu0 0
  %446 = vmatpush.bf16.msra.mxu0 %v410
  %447 = vmatpush.bf16.msra.mxu0 %v376
  %448 = vmatpush.bf16.msra.mxu0 %v372
  %449 = vmatpush.bf16.msra.mxu0 %v368
  %450 = vmatpush.bf16.msra.mxu0 %v364
  %451 = vmatmul.bf16.gmra.mxu0 %v400
  %v452 = vpop.f32.mrf.mxu0
  %v453 = vadd.f32 0.0, %v452
  %v454 = vpop.f32.mrf.mxu0
  %v455 = vadd.f32 0.0, %v454
  %456 = vdwg.mxu0
  %457 = vmatpush.bf16.msra.mxu0 0
  %458 = vmatpush.bf16.msra.mxu0 0
  %459 = vmatpush.bf16.msra.mxu0 0
  %460 = vmatpush.bf16.msra.mxu0 %v413
  %461 = vmatpush.bf16.msra.mxu0 %v377
  %462 = vmatpush.bf16.msra.mxu0 %v373
  %463 = vmatpush.bf16.msra.mxu0 %v369
  %464 = vmatpush.bf16.msra.mxu0 %v365
  %465 = vmatmul.bf16.gmra.mxu0 %v400
  %v466 = vpop.f32.mrf.mxu0
  %v467 = vadd.f32 0.0, %v466
  %v468 = vpop.f32.mrf.mxu0
  %v469 = vadd.f32 0.0, %v468
  %470 = vdwg.mxu0
  %v471 = vadd.f32 %v425, %v439
  %v472 = vadd.f32 %v471, %v453
  %v473 = vadd.f32 %v472, %v467
  %474 = vadd.xlane.f32.xlu0 %v473
  %v475 = vpop.xlane.xlu0 %474
  %v476 = vadd.f32 %v427, %v441
  %v477 = vadd.f32 %v476, %v455
  %v478 = vadd.f32 %v477, %v469
  %479 = vadd.xlane.f32.xlu0 %v478
  %v480 = vpop.xlane.xlu0 %479
  %v481 = vmul.f32 %v475, 0.001953125
  %v482 = vmul.f32 %v480, 0.001953125
  %v483 = vmul.f32 %v425, %v425
  %v484 = vmul.f32 %v439, %v439
  %v485 = vmul.f32 %v453, %v453
  %v486 = vmul.f32 %v467, %v467
  %v487 = vmul.f32 %v427, %v427
  %v488 = vmul.f32 %v441, %v441
  %v489 = vmul.f32 %v455, %v455
  %v490 = vmul.f32 %v469, %v469
  %v491 = vadd.f32 %v483, %v484
  %v492 = vadd.f32 %v491, %v485
  %v493 = vadd.f32 %v492, %v486
  %494 = vadd.xlane.f32.xlu0 %v493
  %v495 = vpop.xlane.xlu0 %494
  %v496 = vadd.f32 %v487, %v488
  %v497 = vadd.f32 %v496, %v489
  %v498 = vadd.f32 %v497, %v490
  %499 = vadd.xlane.f32.xlu0 %v498
  %v500 = vpop.xlane.xlu0 %499
  %v501 = vmul.f32 %v495, 0.001953125
  %v502 = vmul.f32 %v500, 0.001953125
  %v503 = vmul.f32 %v481, %v481
  %v504 = vmul.f32 %v482, %v482
  %v505 = vsub.f32 %v501, %v503
  %v506 = vsub.f32 %v502, %v504
  %v507 = vmax.f32 %v505, 0.0
  %v508 = vmax.f32 %v506, 0.0
  %v509 = vld [vmem:[%s3] sm:$0xff]
  %v510 = vld [vmem:[%s3 + $0x8] sm:$0xff]
  %v511 = vadd.f32 %v507, 1e-05
  %v512 = vadd.f32 %v508, 1e-05
  %v513 = vrsqrt.pop %v511
  %v514 = vmul.f32 %v513, %v511
  %v515 = vmul.f32 %v514, %v513
  %v516 = vmul.f32 0.5, %v515
  %v517 = vsub.f32 1.5, %v516
  %v518 = vmul.f32 %v513, %v517
  %vm519 = vweird.f32 %v511
  %vm520 = vweird.f32 %v513
  %vm521 = vmor %vm519, %vm520
  %v522 = vsel %vm521, %v513, %v518
  %v523 = vrsqrt.pop %v512
  %v524 = vmul.f32 %v523, %v512
  %v525 = vmul.f32 %v524, %v523
  %v526 = vmul.f32 0.5, %v525
  %v527 = vsub.f32 1.5, %v526
  %v528 = vmul.f32 %v523, %v527
  %vm529 = vweird.f32 %v512
  %vm530 = vweird.f32 %v523
  %vm531 = vmor %vm529, %vm530
  %v532 = vsel %vm531, %v523, %v528
  %v533 = vmul.f32 %v509, %v522
  %v534 = vmul.f32 %v510, %v532
  %v535 = vmul.f32 %v481, %v533
  %v536 = vmul.f32 %v482, %v534
  %539 = vrot.lane.b32.xlu0 %v535, 1
  %v540 = vpop.permute.xlu0 %539
  %541 = vrot.lane.b32.xlu0 %v536, 1
  %v542 = vpop.permute.xlu0 %541
  %v545 = vsub.f32 %v509, %v540
  %v546 = vsub.f32 %v510, %v542
  %548 = vset.pattern.permute.xlu0 0
  %549 = vperm.xlu0 %548, %v533
  %v550 = vpop.permute.xlu0 %549
  %553 = vset.pattern.permute.xlu0 0
  %554 = vperm.xlu0 %553, %v534
  %v555 = vpop.permute.xlu0 %554
  %v557 = vmul.f32 %v425, %v550
  %v558 = vmul.f32 %v439, %v550
  %v559 = vmul.f32 %v453, %v550
  %v560 = vmul.f32 %v467, %v550
  %v561 = vmul.f32 %v427, %v555
  %v562 = vmul.f32 %v441, %v555
  %v563 = vmul.f32 %v455, %v555
  %v564 = vmul.f32 %v469, %v555
  %566 = vset.pattern.permute.xlu0 1
  %567 = vperm.xlu0 %566, %v545
  %v568 = vpop.permute.xlu0 %567
  %571 = vset.pattern.permute.xlu0 1
  %572 = vperm.xlu0 %571, %v546
  %v573 = vpop.permute.xlu0 %572
  %v575 = vadd.f32 %v557, %v568
  %v576 = vadd.f32 %v558, %v568
  %v577 = vadd.f32 %v559, %v568
  %v578 = vadd.f32 %v560, %v568
  %v579 = vadd.f32 %v561, %v573
  %v580 = vadd.f32 %v562, %v573
  %v581 = vadd.f32 %v563, %v573
  %v582 = vadd.f32 %v564, %v573
  %v583 = vmax.f32 %v575, 0.0
  %v584 = vmax.f32 %v576, 0.0
  %v585 = vmax.f32 %v577, 0.0
  %v586 = vmax.f32 %v578, 0.0
  %v587 = vmax.f32 %v579, 0.0
  %v588 = vmax.f32 %v580, 0.0
  %v589 = vmax.f32 %v581, 0.0
  %v590 = vmax.f32 %v582, 0.0
  %591 = vst [vmem:[%s4] sm:$0xff] %v583
  %592 = vst [vmem:[%s4 + $0x8] sm:$0xff] %v584
  %593 = vst [vmem:[%s4 + $0x10] sm:$0xff] %v585
  %594 = vst [vmem:[%s4 + $0x18] sm:$0xff] %v586
  %595 = vst [vmem:[%s4 + $0x20] sm:$0xff] %v587
  %596 = vst [vmem:[%s4 + $0x28] sm:$0xff] %v588
  %597 = vst [vmem:[%s4 + $0x30] sm:$0xff] %v589
  %598 = vst [vmem:[%s4 + $0x38] sm:$0xff] %v590
  // Predicated region
  $region18: #{conv_bn_relu.1} parent=0 // pred_check
    _
  $region19: #{conv_bn_relu.1} parent=0 // pred_check_branch
    %600 = sbr.rel (0) target = $region21
  $region20: #{conv_bn_relu.1} parent=0 // pred_region
    _
  $region21: #{conv_bn_relu.1} parent=0 // pred_fallthru
    _
  // Predicated region
  $region22: #{conv_bn_relu.1} parent=0 // pred_check
    _
  $region23: #{conv_bn_relu.1} parent=0 // pred_check_branch
    %602 = sbr.rel (0) target = $region25
  $region24: #{conv_bn_relu.1} parent=0 // pred_region
    _
  $region25: #{conv_bn_relu.1} parent=0 // pred_fallthru
    _

</llo_original>
